<compile_context>
chip_gen: v5e
topology: v5e:2x2
jax: 0.10.0
libtpu: 0.0.40
codegen_flags: <defaults>
</compile_context>

<pallas_src>
import functools

import numpy as np

import jax
import jax.numpy as jnp
from jax.experimental import pallas as pl


# ----------------------------------- kernel -----------------------------------

def attention_kernel(x_ref, wqkv_ref, wo_ref, bo_ref, cos_ref, sin_ref,
                     mask_ref, out_ref, *, heads, dim_head):
    inner = heads * dim_head

    x = x_ref[...].astype(jnp.bfloat16)                      # (B*N, D)

    # Single wide fused projection: [q | k | v | rot_half(q) | rot_half(k)].
    proj = jnp.dot(x, wqkv_ref[...],
                   preferred_element_type=jnp.float32)        # (B*N, 5*inner) f32

    q     = proj[:, 0 * inner:1 * inner]                      # 128-lane aligned slices
    k     = proj[:, 1 * inner:2 * inner]
    v     = proj[:, 2 * inner:3 * inner]
    q_rot = proj[:, 3 * inner:4 * inner]
    k_rot = proj[:, 4 * inner:5 * inner]

    # Rotary embedding (softmax scale already folded into the q weights).
    cos = cos_ref[...]                                        # (B*N, inner) f32
    sin = sin_ref[...]
    q = (q * cos + q_rot * sin).astype(jnp.bfloat16)
    k = (k * cos + k_rot * sin).astype(jnp.bfloat16)
    v = v.astype(jnp.bfloat16)

    mask = mask_ref[...]                                      # (B*N, B*N) additive

    outs = []
    for h in range(heads):                                    # unrolled, H=2
        sl = slice(h * dim_head, (h + 1) * dim_head)
        qh, kh, vh = q[:, sl], k[:, sl], v[:, sl]
        # scores over all rows; cross-batch pairs masked to -1e30
        s = jax.lax.dot_general(qh, kh, (((1,), (1,)), ((), ())),
                                preferred_element_type=jnp.float32)   # (B*N, B*N)
        s = s + mask
        s = s - jnp.max(s, axis=-1, keepdims=True)
        e = jnp.exp(s)
        p = e / jnp.sum(e, axis=-1, keepdims=True)
        outs.append(jnp.dot(p.astype(jnp.bfloat16), vh,
                            preferred_element_type=jnp.float32))      # (B*N, Dh)

    # Concat-heads output projection in one matmul.
    o = jnp.concatenate(outs, axis=-1).astype(jnp.bfloat16)   # (B*N, inner)
    y = jnp.dot(o, wo_ref[...], preferred_element_type=jnp.float32) + bo_ref[...]
    out_ref[...] = y.astype(out_ref.dtype)


# --------------------------------- wrappers ------------------------------------

def rotary_tables(seq_len, dim_head, theta=10000.0):
    """NeoX-style tables matching the reference (pos = cat([freqs, freqs]))."""
    inv_freq = 1.0 / theta ** (jnp.arange(0, dim_head, 2, dtype=jnp.float32) / dim_head)
    t = jnp.arange(seq_len, dtype=jnp.float32)
    fr = jnp.einsum('i,j->ij', t, inv_freq)                   # (N, Dh/2)
    freqs = jnp.concatenate([fr, fr], axis=-1)                # (N, Dh)
    return jnp.cos(freqs), jnp.sin(freqs)


def make_attention_forward(wq, wkv, wo, bo, *, batch, seq, dim, heads, dim_head):
    """One-time parameter prep (hoisted), returns the per-call forward fn."""
    inner = heads * dim_head
    half = dim_head // 2
    scale = dim_head ** -0.5

    # Fold the softmax scale into Wq.
    wq_s = wq * scale
    wk, wv = wkv[:, :inner], wkv[:, inner:]

    def rot_cols(w):
        # rotate_half applied to the per-head output columns of a projection:
        # rotate_half(x @ W) == x @ rot_cols(W).
        w3 = w.reshape(dim, heads, dim_head)
        return jnp.concatenate([-w3[..., half:], w3[..., :half]],
                               axis=-1).reshape(dim, inner)

    wqkv = jnp.concatenate(
        [wq_s, wk, wv, rot_cols(wq_s), rot_cols(wk)], axis=1).astype(jnp.bfloat16)
    wo_b = wo.astype(jnp.bfloat16)                            # (inner, dim)
    bo2 = bo.reshape(1, dim).astype(jnp.float32)

    cos, sin = rotary_tables(seq, dim_head)                   # (N, Dh)
    cos_t = jnp.tile(cos, (batch, heads))                     # (B*N, inner)
    sin_t = jnp.tile(sin, (batch, heads))

    # Additive block-diagonal mask: row/col in different batch elements -> -1e30.
    bids = jnp.repeat(jnp.arange(batch), seq)
    mask = jnp.where(bids[:, None] == bids[None, :], 0.0, -1e30).astype(jnp.float32)

    kern = functools.partial(attention_kernel, heads=heads, dim_head=dim_head)
    # Single fused step: no grid, whole (tiny) operands resident in VMEM.
    fused = pl.pallas_call(
        kern,
        out_shape=jax.ShapeDtypeStruct((batch * seq, dim), jnp.float32),
    )

    def forward(x):
        out = fused(x.reshape(batch * seq, dim), wqkv, wo_b, bo2, cos_t, sin_t, mask)
        return out.reshape(batch, seq, dim)

    return forward


# ------------------------------- pure-JAX reference ----------------------------

def attention_reference(x, wq, wkv, wo, bo, *, heads, dim_head):
    B, N, D = x.shape
    inner = heads * dim_head
    cos, sin = rotary_tables(N, dim_head)

    q = x @ wq
    kv = x @ wkv
    k, v = kv[..., :inner], kv[..., inner:]
    split = lambda t: t.reshape(B, N, heads, dim_head).transpose(0, 2, 1, 3)
    q, k, v = split(q), split(k), split(v)

    def rot_half(t):
        t1, t2 = jnp.split(t, 2, axis=-1)
        return jnp.concatenate([-t2, t1], axis=-1)

    q = q * cos + rot_half(q) * sin
    k = k * cos + rot_half(k) * sin

    s = jnp.einsum('bhnd,bhmd->bhnm', q, k) * dim_head ** -0.5
    p = jax.nn.softmax(s, axis=-1)
    o = jnp.einsum('bhnm,bhmd->bhnd', p, v)
    o = o.transpose(0, 2, 1, 3).reshape(B, N, inner)
    return o @ wo + bo


# ----------------------------------- main --------------------------------------

if __name__ == "__main__":
    key = jax.random.PRNGKey(0)
    B, N, dim = 2, 16, 64
    heads, dim_head = 2, 128            # Dh = 128 keeps q/k/v lane-dense
    inner = heads * dim_head

    kx, kq, kkv, ko, kb = jax.random.split(key, 5)
    x = jax.random.normal(kx, (B, N, dim), jnp.float32)
    wq = jax.random.normal(kq, (dim, inner), jnp.float32) * 0.05       # to_q (no bias)
    wkv = jax.random.normal(kkv, (dim, 2 * inner), jnp.float32) * 0.05  # to_kv (no bias)
    wo = jax.random.normal(ko, (inner, dim), jnp.float32) * 0.05        # to_out.weight
    bo = jax.random.normal(kb, (dim,), jnp.float32) * 0.05              # to_out.bias

    fwd = make_attention_forward(wq, wkv, wo, bo, batch=B, seq=N, dim=dim,
                                 heads=heads, dim_head=dim_head)
    y = fwd(x)
    jax.block_until_ready(y)

    y_ref = attention_reference(x, wq, wkv, wo, bo, heads=heads, dim_head=dim_head)
    assert y.shape == (B, N, dim) and y.dtype == jnp.float32
    np.testing.assert_allclose(np.asarray(y), np.asarray(y_ref), rtol=2e-2, atol=2e-2)
    print("KERNEL_OK")
</pallas_src>

<mosaic_0001>
module attributes {stable_mosaic.version = 11 : i64} {
  func.func @attention_kernel(%arg0: memref<32x64xf32, #tpu.memory_space<vmem>>, %arg1: memref<64x1280xbf16, #tpu.memory_space<vmem>>, %arg2: memref<256x64xbf16, #tpu.memory_space<vmem>>, %arg3: memref<1x64xf32, #tpu.memory_space<vmem>>, %arg4: memref<32x256xf32, #tpu.memory_space<vmem>>, %arg5: memref<32x256xf32, #tpu.memory_space<vmem>>, %arg6: memref<32x32xf32, #tpu.memory_space<vmem>>, %arg7: memref<32x64xf32, #tpu.memory_space<vmem>>) attributes {dimension_semantics = [], scalar_prefetch = 0 : i64, scratch_operands = 0 : i64, tpu.core_type = #tpu.core_type<tc>} {
    %c0 = arith.constant 0 : index
    %c0_0 = arith.constant 0 : index
    %0 = vector.load %arg0[%c0, %c0_0] : memref<32x64xf32, #tpu.memory_space<vmem>>, vector<32x64xf32>
    %1 = arith.truncf %0 : vector<32x64xf32> to vector<32x64xbf16>
    %c0_1 = arith.constant 0 : index
    %c0_2 = arith.constant 0 : index
    %2 = vector.load %arg1[%c0_1, %c0_2] : memref<64x1280xbf16, #tpu.memory_space<vmem>>, vector<64x1280xbf16>
    %cst = arith.constant dense<0.000000e+00> : vector<32x1280xf32>
    %3 = tpu.matmul %1, %2, %cst {dimension_numbers = #tpu.dot_dimension_numbers<[1], [0], [0], [1], [0, 0, 1, 1], [], []>} : vector<32x64xbf16>, vector<64x1280xbf16>, vector<32x1280xf32> -> vector<32x1280xf32>
    %4 = vector.extract_strided_slice %3 {offsets = [0, 0], sizes = [32, 256], strides = [1, 1]} : vector<32x1280xf32> to vector<32x256xf32>
    %5 = vector.extract_strided_slice %3 {offsets = [0, 256], sizes = [32, 256], strides = [1, 1]} : vector<32x1280xf32> to vector<32x256xf32>
    %6 = vector.extract_strided_slice %3 {offsets = [0, 512], sizes = [32, 256], strides = [1, 1]} : vector<32x1280xf32> to vector<32x256xf32>
    %7 = vector.extract_strided_slice %3 {offsets = [0, 768], sizes = [32, 256], strides = [1, 1]} : vector<32x1280xf32> to vector<32x256xf32>
    %8 = vector.extract_strided_slice %3 {offsets = [0, 1024], sizes = [32, 256], strides = [1, 1]} : vector<32x1280xf32> to vector<32x256xf32>
    %c0_3 = arith.constant 0 : index
    %c0_4 = arith.constant 0 : index
    %9 = vector.load %arg4[%c0_3, %c0_4] : memref<32x256xf32, #tpu.memory_space<vmem>>, vector<32x256xf32>
    %c0_5 = arith.constant 0 : index
    %c0_6 = arith.constant 0 : index
    %10 = vector.load %arg5[%c0_5, %c0_6] : memref<32x256xf32, #tpu.memory_space<vmem>>, vector<32x256xf32>
    %11 = arith.mulf %4, %9 : vector<32x256xf32>
    %12 = arith.mulf %7, %10 : vector<32x256xf32>
    %13 = arith.addf %11, %12 : vector<32x256xf32>
    %14 = arith.truncf %13 : vector<32x256xf32> to vector<32x256xbf16>
    %15 = arith.mulf %5, %9 : vector<32x256xf32>
    %16 = arith.mulf %8, %10 : vector<32x256xf32>
    %17 = arith.addf %15, %16 : vector<32x256xf32>
    %18 = arith.truncf %17 : vector<32x256xf32> to vector<32x256xbf16>
    %19 = arith.truncf %6 : vector<32x256xf32> to vector<32x256xbf16>
    %c0_7 = arith.constant 0 : index
    %c0_8 = arith.constant 0 : index
    %20 = vector.load %arg6[%c0_7, %c0_8] : memref<32x32xf32, #tpu.memory_space<vmem>>, vector<32x32xf32>
    %21 = vector.extract_strided_slice %14 {offsets = [0, 0], sizes = [32, 128], strides = [1, 1]} : vector<32x256xbf16> to vector<32x128xbf16>
    %22 = vector.extract_strided_slice %18 {offsets = [0, 0], sizes = [32, 128], strides = [1, 1]} : vector<32x256xbf16> to vector<32x128xbf16>
    %23 = vector.extract_strided_slice %19 {offsets = [0, 0], sizes = [32, 128], strides = [1, 1]} : vector<32x256xbf16> to vector<32x128xbf16>
    %cst_9 = arith.constant dense<0.000000e+00> : vector<32x32xf32>
    %24 = tpu.matmul %21, %22, %cst_9 {dimension_numbers = #tpu.dot_dimension_numbers<[1], [1], [0], [0], [0, 0, 1, 0], [], []>} : vector<32x128xbf16>, vector<32x128xbf16>, vector<32x32xf32> -> vector<32x32xf32>
    %25 = arith.addf %24, %20 : vector<32x32xf32>
    %cst_10 = arith.constant dense<0xFF800000> : vector<32xf32>
    %26 = vector.multi_reduction <maximumf>, %25, %cst_10 [1] : vector<32x32xf32> to vector<32xf32>
    %27 = vector.shape_cast %26 : vector<32xf32> to vector<32x1xf32>
    %28 = vector.broadcast %27 : vector<32x1xf32> to vector<32x32xf32>
    %29 = arith.subf %25, %28 : vector<32x32xf32>
    %30 = math.exp %29 : vector<32x32xf32>
    %cst_11 = arith.constant dense<0.000000e+00> : vector<32xf32>
    %31 = vector.multi_reduction <add>, %30, %cst_11 [1] : vector<32x32xf32> to vector<32xf32>
    %32 = vector.shape_cast %31 : vector<32xf32> to vector<32x1xf32>
    %33 = vector.broadcast %32 : vector<32x1xf32> to vector<32x32xf32>
    %34 = arith.divf %30, %33 : vector<32x32xf32>
    %35 = arith.truncf %34 : vector<32x32xf32> to vector<32x32xbf16>
    %cst_12 = arith.constant dense<0.000000e+00> : vector<32x128xf32>
    %36 = tpu.matmul %35, %23, %cst_12 {dimension_numbers = #tpu.dot_dimension_numbers<[1], [0], [0], [1], [0, 0, 1, 1], [], []>} : vector<32x32xbf16>, vector<32x128xbf16>, vector<32x128xf32> -> vector<32x128xf32>
    %37 = vector.extract_strided_slice %14 {offsets = [0, 128], sizes = [32, 128], strides = [1, 1]} : vector<32x256xbf16> to vector<32x128xbf16>
    %38 = vector.extract_strided_slice %18 {offsets = [0, 128], sizes = [32, 128], strides = [1, 1]} : vector<32x256xbf16> to vector<32x128xbf16>
    %39 = vector.extract_strided_slice %19 {offsets = [0, 128], sizes = [32, 128], strides = [1, 1]} : vector<32x256xbf16> to vector<32x128xbf16>
    %cst_13 = arith.constant dense<0.000000e+00> : vector<32x32xf32>
    %40 = tpu.matmul %37, %38, %cst_13 {dimension_numbers = #tpu.dot_dimension_numbers<[1], [1], [0], [0], [0, 0, 1, 0], [], []>} : vector<32x128xbf16>, vector<32x128xbf16>, vector<32x32xf32> -> vector<32x32xf32>
    %41 = arith.addf %40, %20 : vector<32x32xf32>
    %cst_14 = arith.constant dense<0xFF800000> : vector<32xf32>
    %42 = vector.multi_reduction <maximumf>, %41, %cst_14 [1] : vector<32x32xf32> to vector<32xf32>
    %43 = vector.shape_cast %42 : vector<32xf32> to vector<32x1xf32>
    %44 = vector.broadcast %43 : vector<32x1xf32> to vector<32x32xf32>
    %45 = arith.subf %41, %44 : vector<32x32xf32>
    %46 = math.exp %45 : vector<32x32xf32>
    %cst_15 = arith.constant dense<0.000000e+00> : vector<32xf32>
    %47 = vector.multi_reduction <add>, %46, %cst_15 [1] : vector<32x32xf32> to vector<32xf32>
    %48 = vector.shape_cast %47 : vector<32xf32> to vector<32x1xf32>
    %49 = vector.broadcast %48 : vector<32x1xf32> to vector<32x32xf32>
    %50 = arith.divf %46, %49 : vector<32x32xf32>
    %51 = arith.truncf %50 : vector<32x32xf32> to vector<32x32xbf16>
    %cst_16 = arith.constant dense<0.000000e+00> : vector<32x128xf32>
    %52 = tpu.matmul %51, %39, %cst_16 {dimension_numbers = #tpu.dot_dimension_numbers<[1], [0], [0], [1], [0, 0, 1, 1], [], []>} : vector<32x32xbf16>, vector<32x128xbf16>, vector<32x128xf32> -> vector<32x128xf32>
    %53 = tpu.concatenate %36, %52 in 1 : vector<32x128xf32>, vector<32x128xf32> -> vector<32x256xf32>
    %54 = arith.truncf %53 : vector<32x256xf32> to vector<32x256xbf16>
    %c0_17 = arith.constant 0 : index
    %c0_18 = arith.constant 0 : index
    %55 = vector.load %arg2[%c0_17, %c0_18] : memref<256x64xbf16, #tpu.memory_space<vmem>>, vector<256x64xbf16>
    %cst_19 = arith.constant dense<0.000000e+00> : vector<32x64xf32>
    %56 = tpu.matmul %54, %55, %cst_19 {dimension_numbers = #tpu.dot_dimension_numbers<[1], [0], [0], [1], [0, 0, 1, 1], [], []>} : vector<32x256xbf16>, vector<256x64xbf16>, vector<32x64xf32> -> vector<32x64xf32>
    %c0_20 = arith.constant 0 : index
    %c0_21 = arith.constant 0 : index
    %57 = vector.load %arg3[%c0_20, %c0_21] : memref<1x64xf32, #tpu.memory_space<vmem>>, vector<1x64xf32>
    %58 = vector.broadcast %57 : vector<1x64xf32> to vector<32x64xf32>
    %59 = arith.addf %56, %58 : vector<32x64xf32>
    %c0_22 = arith.constant 0 : index
    %c0_23 = arith.constant 0 : index
    %60 = vector.load %arg7[%c0_22, %c0_23] : memref<32x64xf32, #tpu.memory_space<vmem>>, vector<32x64xf32>
    tpu.vector_store %arg7[%c0_22, %c0_23], %59 {strides = array<i32>} : memref<32x64xf32, #tpu.memory_space<vmem>>, vector<32x64xf32>,
    return
  }
}

</mosaic_0001>

<llo_original>
// kernel: tpu_custom_call.1
$region0: #{tpu_custom_call.1}
  #allocation0 [shape = 'u32[]', space=smem, size = 0x4, offset = 0x4, fixed_abs, tag = 'smem constant byte address 0x4 - core index']
  #allocation1 [shape = 'u32[72,128]{1,0:T(1,128)}', space=vmem, size = 0x9000, scoped, tag = 'internal scratch']
  %s0 = inlined_call_operand.vmem [shape: f32[32,64], index: 0, kind: input, shape index: {}]
  %s1 = inlined_call_operand.hbm [shape: bf16[64,1280], index: 1, kind: input, shape index: {}]
  %s2 = inlined_call_operand.vmem [shape: bf16[256,64], index: 2, kind: input, shape index: {}]
  %s3 = inlined_call_operand.vmem [shape: f32[1,64], index: 3, kind: input, shape index: {}]
  %s4 = inlined_call_operand.vmem [shape: f32[32,256], index: 4, kind: input, shape index: {}]
  %s5 = inlined_call_operand.vmem [shape: f32[32,256], index: 5, kind: input, shape index: {}]
  %s6 = inlined_call_operand.vmem [shape: f32[32,32], index: 6, kind: input, shape index: {}]
  %s7 = inlined_call_operand.hbm [shape: f32[32,64], index: 7, kind: output, shape index: {}]
  %s8 = sld [smem:[#allocation0]]
  $region42: #{tpu_custom_call.1} parent=0
    _
  %s10 = ssub.s32 1, %s8
  %s11 = scalar_select 0, %s10, %s8
  $region1: #{tpu_custom_call.1} parent=0
    #allocation2 [shape = 'u8[163840]{0}', space=vmem, size = 0x28000, scoped, tag = 'input window, operand 1, single buffered']
    #allocation3 [shape = 's32[1]{0}', space=sflag, size = 0x4, scoped, tag = 'scoped memory for tpu_custom_call.1']
    #allocation4 [shape = 's32[1]{0}', space=sflag, size = 0x4, scoped, tag = 'scoped memory for tpu_custom_call.1']
    #allocation5 [shape = 'u8[16384]{0}', space=vmem, size = 0x4000, scoped, tag = 'output window, operand 0, single buffered']
    %12 = vsyncpa [#allocation3], 0
    %13 = vsyncpa [#allocation4], 0
    // Predicated region
    $region2: #{tpu_custom_call.1} parent=1 // pred_check
      _
    $region3: #{tpu_custom_call.1} parent=1 // pred_check_branch
      %15 = sbr.rel (0) target = $region5
    $region4: #{tpu_custom_call.1} parent=1 // pred_region
      _
    $region5: #{tpu_custom_call.1} parent=1 // pred_fallthru
      _
    // Predicated region
    $region6: #{tpu_custom_call.1} parent=1 // pred_check
      _
    $region7: #{tpu_custom_call.1} parent=1 // pred_check_branch
      %17 = sbr.rel (0) target = $region9
    $region8: #{tpu_custom_call.1} parent=1 // pred_region
      %19 = vsyncadd [#allocation3], 0
      %s20 = sshll.u32 %s1, 4
      %s21 = int_to_ptr.hbm [resolvable:$true] %s20
      %s22 = sshll.u32 [#allocation2], 4
      %s23 = int_to_ptr.vmem [resolvable:$true] %s22
      %28 = dma.hbm_to_vmem [thread:$0]  %s21, 5120, %s23, [#allocation3], 640, 640, 40
    $region9: #{tpu_custom_call.1} parent=1 // pred_fallthru
      _
    // Predicated region
    $region10: #{tpu_custom_call.1} parent=1 // pred_check
      _
    $region11: #{tpu_custom_call.1} parent=1 // pred_check_branch
      %30 = sbr.rel (0) target = $region13
    $region12: #{tpu_custom_call.1} parent=1 // pred_region
      _
    $region13: #{tpu_custom_call.1} parent=1 // pred_fallthru
      _
    // Predicated region
    $region14: #{tpu_custom_call.1} parent=1 // pred_check
      _
    $region15: #{tpu_custom_call.1} parent=1 // pred_check_branch
      %32 = sbr.rel (0) target = $region17
    $region16: #{tpu_custom_call.1} parent=1 // pred_region
      _
    $region17: #{tpu_custom_call.1} parent=1 // pred_fallthru
      _
    // Predicated region
    $region18: #{tpu_custom_call.1} parent=1 // pred_check
      _
    $region19: #{tpu_custom_call.1} parent=1 // pred_check_branch
      %34 = sbr.rel (0) target = $region21
    $region20: #{tpu_custom_call.1} parent=1 // pred_region
      _
    $region21: #{tpu_custom_call.1} parent=1 // pred_fallthru
      _
    // Predicated region
    $region22: #{tpu_custom_call.1} parent=1 // pred_check
      _
    $region23: #{tpu_custom_call.1} parent=1 // pred_check_branch
      %36 = sbr.rel (0) target = $region25
    $region24: #{tpu_custom_call.1} parent=1 // pred_region
      _
    $region25: #{tpu_custom_call.1} parent=1 // pred_fallthru
      _
    // Predicated region
    $region26: #{tpu_custom_call.1} parent=1 // pred_check
      _
    $region27: #{tpu_custom_call.1} parent=1 // pred_check_branch
      %38 = sbr.rel (0) target = $region29
    $region28: #{tpu_custom_call.1} parent=1 // pred_region
      _
    $region29: #{tpu_custom_call.1} parent=1 // pred_fallthru
      _
    // Predicated region
    $region30: #{tpu_custom_call.1} parent=1 // pred_check
      _
    $region31: #{tpu_custom_call.1} parent=1 // pred_check_branch
      %40 = sbr.rel (0) target = $region33
    $region32: #{tpu_custom_call.1} parent=1 // pred_region
      %42 = dma.done [#allocation3], 5120
    $region33: #{tpu_custom_call.1} parent=1 // pred_fallthru
      _
    %v44 = vld [vmem:[%s0] sm:$0xff]
    %v45 = vld [vmem:[%s0 + $0x8] sm:$0xff]
    %v46 = vld [vmem:[%s0 + $0x10] sm:$0xff]
    %v47 = vld [vmem:[%s0 + $0x18] sm:$0xff]
    %v48 = vpack.c.bf16 %v45, %v44
    %v49 = vpack.c.bf16 %v47, %v46
    %v50 = vld [vmem:[#allocation2] sm:$0xff]
    %v51 = vld [vmem:[#allocation2 + $0x8] sm:$0xff]
    %v52 = vld [vmem:[#allocation2 + $0x10] sm:$0xff]
    %v53 = vld [vmem:[#allocation2 + $0x18] sm:$0xff]
    %v54 = vld [vmem:[#allocation2 + $0x20] sm:$0xff]
    %v55 = vld [vmem:[#allocation2 + $0x28] sm:$0xff]
    %v56 = vld [vmem:[#allocation2 + $0x30] sm:$0xff]
    %v57 = vld [vmem:[#allocation2 + $0x38] sm:$0xff]
    %v58 = vld [vmem:[#allocation2 + $0x40] sm:$0xff]
    %v59 = vld [vmem:[#allocation2 + $0x48] sm:$0xff]
    %v60 = vld [vmem:[#allocation2 + $0x50] sm:$0xff]
    %v61 = vld [vmem:[#allocation2 + $0x58] sm:$0xff]
    %v62 = vld [vmem:[#allocation2 + $0x60] sm:$0xff]
    %v63 = vld [vmem:[#allocation2 + $0x68] sm:$0xff]
    %v64 = vld [vmem:[#allocation2 + $0x70] sm:$0xff]
    %v65 = vld [vmem:[#allocation2 + $0x78] sm:$0xff]
    %v66 = vld [vmem:[#allocation2 + $0x80] sm:$0xff]
    %v67 = vld [vmem:[#allocation2 + $0x88] sm:$0xff]
    %v68 = vld [vmem:[#allocation2 + $0x90] sm:$0xff]
    %v69 = vld [vmem:[#allocation2 + $0x98] sm:$0xff]
    %v70 = vld [vmem:[#allocation2 + $0xa0] sm:$0xff]
    %v71 = vld [vmem:[#allocation2 + $0xa8] sm:$0xff]
    %v72 = vld [vmem:[#allocation2 + $0xb0] sm:$0xff]
    %v73 = vld [vmem:[#allocation2 + $0xb8] sm:$0xff]
    %v74 = vld [vmem:[#allocation2 + $0xc0] sm:$0xff]
    %v75 = vld [vmem:[#allocation2 + $0xc8] sm:$0xff]
    %v76 = vld [vmem:[#allocation2 + $0xd0] sm:$0xff]
    %v77 = vld [vmem:[#allocation2 + $0xd8] sm:$0xff]
    %v78 = vld [vmem:[#allocation2 + $0xe0] sm:$0xff]
    %v79 = vld [vmem:[#allocation2 + $0xe8] sm:$0xff]
    %v80 = vld [vmem:[#allocation2 + $0xf0] sm:$0xff]
    %v81 = vld [vmem:[#allocation2 + $0xf8] sm:$0xff]
    %v82 = vld [vmem:[#allocation2 + $0x100] sm:$0xff]
    %v83 = vld [vmem:[#allocation2 + $0x108] sm:$0xff]
    %v84 = vld [vmem:[#allocation2 + $0x110] sm:$0xff]
    %v85 = vld [vmem:[#allocation2 + $0x118] sm:$0xff]
    %v86 = vld [vmem:[#allocation2 + $0x120] sm:$0xff]
    %v87 = vld [vmem:[#allocation2 + $0x128] sm:$0xff]
    %v88 = vld [vmem:[#allocation2 + $0x130] sm:$0xff]
    %v89 = vld [vmem:[#allocation2 + $0x138] sm:$0xff]
    %v130 = vunpack.c.l.b16 %v50
    %v131 = vunpack.c.h.b16 %v50
    %v132 = vunpack.c.l.b16 %v51
    %v133 = vunpack.c.h.b16 %v51
    %v134 = vunpack.c.l.b16 %v52
    %v135 = vunpack.c.h.b16 %v52
    %v136 = vunpack.c.l.b16 %v53
    %v137 = vunpack.c.h.b16 %v53
    %v138 = vunpack.c.l.b16 %v54
    %v139 = vunpack.c.h.b16 %v54
    %v140 = vunpack.c.l.b16 %v55
    %v141 = vunpack.c.h.b16 %v55
    %v142 = vunpack.c.l.b16 %v56
    %v143 = vunpack.c.h.b16 %v56
    %v144 = vunpack.c.l.b16 %v57
    %v145 = vunpack.c.h.b16 %v57
    %v146 = vunpack.c.l.b16 %v58
    %v147 = vunpack.c.h.b16 %v58
    %v148 = vunpack.c.l.b16 %v59
    %v149 = vunpack.c.h.b16 %v59
    %v150 = vunpack.c.l.b16 %v60
    %v151 = vunpack.c.h.b16 %v60
    %v152 = vunpack.c.l.b16 %v61
    %v153 = vunpack.c.h.b16 %v61
    %v154 = vunpack.c.l.b16 %v62
    %v155 = vunpack.c.h.b16 %v62
    %v156 = vunpack.c.l.b16 %v63
    %v157 = vunpack.c.h.b16 %v63
    %v158 = vunpack.c.l.b16 %v64
    %v159 = vunpack.c.h.b16 %v64
    %v160 = vunpack.c.l.b16 %v65
    %v161 = vunpack.c.h.b16 %v65
    %v162 = vunpack.c.l.b16 %v66
    %v163 = vunpack.c.h.b16 %v66
    %v164 = vunpack.c.l.b16 %v67
    %v165 = vunpack.c.h.b16 %v67
    %v166 = vunpack.c.l.b16 %v68
    %v167 = vunpack.c.h.b16 %v68
    %v168 = vunpack.c.l.b16 %v69
    %v169 = vunpack.c.h.b16 %v69
    %v170 = vunpack.c.l.b16 %v70
    %v171 = vunpack.c.h.b16 %v70
    %v172 = vunpack.c.l.b16 %v71
    %v173 = vunpack.c.h.b16 %v71
    %v174 = vunpack.c.l.b16 %v72
    %v175 = vunpack.c.h.b16 %v72
    %v176 = vunpack.c.l.b16 %v73
    %v177 = vunpack.c.h.b16 %v73
    %v178 = vunpack.c.l.b16 %v74
    %v179 = vunpack.c.h.b16 %v74
    %v180 = vunpack.c.l.b16 %v75
    %v181 = vunpack.c.h.b16 %v75
    %v182 = vunpack.c.l.b16 %v76
    %v183 = vunpack.c.h.b16 %v76
    %v184 = vunpack.c.l.b16 %v77
    %v185 = vunpack.c.h.b16 %v77
    %v186 = vunpack.c.l.b16 %v78
    %v187 = vunpack.c.h.b16 %v78
    %v188 = vunpack.c.l.b16 %v79
    %v189 = vunpack.c.h.b16 %v79
    %v190 = vunpack.c.l.b16 %v80
    %v191 = vunpack.c.h.b16 %v80
    %v192 = vunpack.c.l.b16 %v81
    %v193 = vunpack.c.h.b16 %v81
    %v194 = vunpack.c.l.b16 %v82
    %v195 = vunpack.c.h.b16 %v82
    %v196 = vunpack.c.l.b16 %v83
    %v197 = vunpack.c.h.b16 %v83
    %v198 = vunpack.c.l.b16 %v84
    %v199 = vunpack.c.h.b16 %v84
    %v200 = vunpack.c.l.b16 %v85
    %v201 = vunpack.c.h.b16 %v85
    %v202 = vunpack.c.l.b16 %v86
    %v203 = vunpack.c.h.b16 %v86
    %v204 = vunpack.c.l.b16 %v87
    %v205 = vunpack.c.h.b16 %v87
    %v206 = vunpack.c.l.b16 %v88
    %v207 = vunpack.c.h.b16 %v88
    %v208 = vunpack.c.l.b16 %v89
    %v209 = vunpack.c.h.b16 %v89
    %v210 = vpack.c.b16 %v140, %v130
    %v211 = vpack.c.b16 %v141, %v131
    %v212 = vpack.c.b16 %v142, %v132
    %v213 = vpack.c.b16 %v143, %v133
    %v214 = vpack.c.b16 %v144, %v134
    %v215 = vpack.c.b16 %v145, %v135
    %v216 = vpack.c.b16 %v146, %v136
    %v217 = vpack.c.b16 %v147, %v137
    %v218 = vpack.c.b16 %v148, %v138
    %v219 = vpack.c.b16 %v149, %v139
    %v220 = vpack.c.b16 %v160, %v150
    %v221 = vpack.c.b16 %v161, %v151
    %v222 = vpack.c.b16 %v162, %v152
    %v223 = vpack.c.b16 %v163, %v153
    %v224 = vpack.c.b16 %v164, %v154
    %v225 = vpack.c.b16 %v165, %v155
    %v226 = vpack.c.b16 %v166, %v156
    %v227 = vpack.c.b16 %v167, %v157
    %v228 = vpack.c.b16 %v168, %v158
    %v229 = vpack.c.b16 %v169, %v159
    %v230 = vpack.c.b16 %v180, %v170
    %v231 = vpack.c.b16 %v181, %v171
    %v232 = vpack.c.b16 %v182, %v172
    %v233 = vpack.c.b16 %v183, %v173
    %v234 = vpack.c.b16 %v184, %v174
    %v235 = vpack.c.b16 %v185, %v175
    %v236 = vpack.c.b16 %v186, %v176
    %v237 = vpack.c.b16 %v187, %v177
    %v238 = vpack.c.b16 %v188, %v178
    %v239 = vpack.c.b16 %v189, %v179
    %v240 = vpack.c.b16 %v200, %v190
    %v241 = vpack.c.b16 %v201, %v191
    %v242 = vpack.c.b16 %v202, %v192
    %v243 = vpack.c.b16 %v203, %v193
    %v244 = vpack.c.b16 %v204, %v194
    %v245 = vpack.c.b16 %v205, %v195
    %v246 = vpack.c.b16 %v206, %v196
    %v247 = vpack.c.b16 %v207, %v197
    %v248 = vpack.c.b16 %v208, %v198
    %v249 = vpack.c.b16 %v209, %v199
    %vm290 = vcmask 523264
    %v292 = vsel %vm290, %v48, 0
    %v295 = vsel %vm290, %v49, 0
    %297 = vmatpush.bf16.msra.mxu0 0
    %298 = vmatpush.bf16.msra.mxu0 0
    %299 = vmatpush.bf16.msra.mxu0 0
    %300 = vmatpush.bf16.msra.mxu0 0
    %301 = vmatpush.bf16.msra.mxu0 %v240
    %302 = vmatpush.bf16.msra.mxu0 %v230
    %303 = vmatpush.bf16.msra.mxu0 %v220
    %304 = vmatpush.bf16.msra.mxu0 %v210
    %305 = vmatmul.bf16.gmra.mxu0 %v292
    %v306 = vpop.f32.mrf.mxu0
    %v307 = vadd.f32 0.0, %v306
    %v308 = vpop.f32.mrf.mxu0
    %v309 = vadd.f32 0.0, %v308
    %310 = vmatmul.bf16.gmra.mxu0 %v295
    %v311 = vpop.f32.mrf.mxu0
    %v312 = vadd.f32 0.0, %v311
    %v313 = vpop.f32.mrf.mxu0
    %v314 = vadd.f32 0.0, %v313
    %315 = vdwg.mxu0
    %316 = vmatpush.bf16.msra.mxu0 0
    %317 = vmatpush.bf16.msra.mxu0 0
    %318 = vmatpush.bf16.msra.mxu0 0
    %319 = vmatpush.bf16.msra.mxu0 0
    %320 = vmatpush.bf16.msra.mxu0 %v241
    %321 = vmatpush.bf16.msra.mxu0 %v231
    %322 = vmatpush.bf16.msra.mxu0 %v221
    %323 = vmatpush.bf16.msra.mxu0 %v211
    %324 = vmatmul.bf16.gmra.mxu0 %v292
    %v325 = vpop.f32.mrf.mxu0
    %v326 = vadd.f32 0.0, %v325
    %v327 = vpop.f32.mrf.mxu0
    %v328 = vadd.f32 0.0, %v327
    %329 = vmatmul.bf16.gmra.mxu0 %v295
    %v330 = vpop.f32.mrf.mxu0
    %v331 = vadd.f32 0.0, %v330
    %v332 = vpop.f32.mrf.mxu0
    %v333 = vadd.f32 0.0, %v332
    %334 = vdwg.mxu0
    %335 = vmatpush.bf16.msra.mxu0 0
    %336 = vmatpush.bf16.msra.mxu0 0
    %337 = vmatpush.bf16.msra.mxu0 0
    %338 = vmatpush.bf16.msra.mxu0 0
    %339 = vmatpush.bf16.msra.mxu0 %v242
    %340 = vmatpush.bf16.msra.mxu0 %v232
    %341 = vmatpush.bf16.msra.mxu0 %v222
    %342 = vmatpush.bf16.msra.mxu0 %v212
    %343 = vmatmul.bf16.gmra.mxu0 %v292
    %v344 = vpop.f32.mrf.mxu0
    %v345 = vadd.f32 0.0, %v344
    %v346 = vpop.f32.mrf.mxu0
    %v347 = vadd.f32 0.0, %v346
    %348 = vmatmul.bf16.gmra.mxu0 %v295
    %v349 = vpop.f32.mrf.mxu0
    %v350 = vadd.f32 0.0, %v349
    %v351 = vpop.f32.mrf.mxu0
    %v352 = vadd.f32 0.0, %v351
    %353 = vdwg.mxu0
    %354 = vmatpush.bf16.msra.mxu0 0
    %355 = vmatpush.bf16.msra.mxu0 0
    %356 = vmatpush.bf16.msra.mxu0 0
    %357 = vmatpush.bf16.msra.mxu0 0
    %358 = vmatpush.bf16.msra.mxu0 %v243
    %359 = vmatpush.bf16.msra.mxu0 %v233
    %360 = vmatpush.bf16.msra.mxu0 %v223
    %361 = vmatpush.bf16.msra.mxu0 %v213
    %362 = vmatmul.bf16.gmra.mxu0 %v292
    %v363 = vpop.f32.mrf.mxu0
    %v364 = vadd.f32 0.0, %v363
    %v365 = vpop.f32.mrf.mxu0
    %v366 = vadd.f32 0.0, %v365
    %367 = vmatmul.bf16.gmra.mxu0 %v295
    %v368 = vpop.f32.mrf.mxu0
    %v369 = vadd.f32 0.0, %v368
    %v370 = vpop.f32.mrf.mxu0
    %v371 = vadd.f32 0.0, %v370
    %372 = vdwg.mxu0
    %373 = vmatpush.bf16.msra.mxu0 0
    %374 = vmatpush.bf16.msra.mxu0 0
    %375 = vmatpush.bf16.msra.mxu0 0
    %376 = vmatpush.bf16.msra.mxu0 0
    %377 = vmatpush.bf16.msra.mxu0 %v244
    %378 = vmatpush.bf16.msra.mxu0 %v234
    %379 = vmatpush.bf16.msra.mxu0 %v224
    %380 = vmatpush.bf16.msra.mxu0 %v214
    %381 = vmatmul.bf16.gmra.mxu0 %v292
    %v382 = vpop.f32.mrf.mxu0
    %v383 = vadd.f32 0.0, %v382
    %v384 = vpop.f32.mrf.mxu0
    %v385 = vadd.f32 0.0, %v384
    %386 = vmatmul.bf16.gmra.mxu0 %v295
    %v387 = vpop.f32.mrf.mxu0
    %v388 = vadd.f32 0.0, %v387
    %v389 = vpop.f32.mrf.mxu0
    %v390 = vadd.f32 0.0, %v389
    %391 = vdwg.mxu0
    %392 = vmatpush.bf16.msra.mxu0 0
    %393 = vmatpush.bf16.msra.mxu0 0
    %394 = vmatpush.bf16.msra.mxu0 0
    %395 = vmatpush.bf16.msra.mxu0 0
    %396 = vmatpush.bf16.msra.mxu0 %v245
    %397 = vmatpush.bf16.msra.mxu0 %v235
    %398 = vmatpush.bf16.msra.mxu0 %v225
    %399 = vmatpush.bf16.msra.mxu0 %v215
    %400 = vmatmul.bf16.gmra.mxu0 %v292
    %v401 = vpop.f32.mrf.mxu0
    %v402 = vadd.f32 0.0, %v401
    %v403 = vpop.f32.mrf.mxu0
    %v404 = vadd.f32 0.0, %v403
    %405 = vmatmul.bf16.gmra.mxu0 %v295
    %v406 = vpop.f32.mrf.mxu0
    %v407 = vadd.f32 0.0, %v406
    %v408 = vpop.f32.mrf.mxu0
    %v409 = vadd.f32 0.0, %v408
    %410 = vdwg.mxu0
    %411 = vmatpush.bf16.msra.mxu0 0
    %412 = vmatpush.bf16.msra.mxu0 0
    %413 = vmatpush.bf16.msra.mxu0 0
    %414 = vmatpush.bf16.msra.mxu0 0
    %415 = vmatpush.bf16.msra.mxu0 %v246
    %416 = vmatpush.bf16.msra.mxu0 %v236
    %417 = vmatpush.bf16.msra.mxu0 %v226
    %418 = vmatpush.bf16.msra.mxu0 %v216
    %419 = vmatmul.bf16.gmra.mxu0 %v292
    %v420 = vpop.f32.mrf.mxu0
    %v421 = vadd.f32 0.0, %v420
    %v422 = vpop.f32.mrf.mxu0
    %v423 = vadd.f32 0.0, %v422
    %424 = vmatmul.bf16.gmra.mxu0 %v295
    %v425 = vpop.f32.mrf.mxu0
    %v426 = vadd.f32 0.0, %v425
    %v427 = vpop.f32.mrf.mxu0
    %v428 = vadd.f32 0.0, %v427
    %429 = vdwg.mxu0
    %430 = vmatpush.bf16.msra.mxu0 0
    %431 = vmatpush.bf16.msra.mxu0 0
    %432 = vmatpush.bf16.msra.mxu0 0
    %433 = vmatpush.bf16.msra.mxu0 0
    %434 = vmatpush.bf16.msra.mxu0 %v247
    %435 = vmatpush.bf16.msra.mxu0 %v237
    %436 = vmatpush.bf16.msra.mxu0 %v227
    %437 = vmatpush.bf16.msra.mxu0 %v217
    %438 = vmatmul.bf16.gmra.mxu0 %v292
    %v439 = vpop.f32.mrf.mxu0
    %v440 = vadd.f32 0.0, %v439
    %v441 = vpop.f32.mrf.mxu0
    %v442 = vadd.f32 0.0, %v441
    %443 = vmatmul.bf16.gmra.mxu0 %v295
    %v444 = vpop.f32.mrf.mxu0
    %v445 = vadd.f32 0.0, %v444
    %v446 = vpop.f32.mrf.mxu0
    %v447 = vadd.f32 0.0, %v446
    %448 = vdwg.mxu0
    %449 = vmatpush.bf16.msra.mxu0 0
    %450 = vmatpush.bf16.msra.mxu0 0
    %451 = vmatpush.bf16.msra.mxu0 0
    %452 = vmatpush.bf16.msra.mxu0 0
    %453 = vmatpush.bf16.msra.mxu0 %v248
    %454 = vmatpush.bf16.msra.mxu0 %v238
    %455 = vmatpush.bf16.msra.mxu0 %v228
    %456 = vmatpush.bf16.msra.mxu0 %v218
    %457 = vmatmul.bf16.gmra.mxu0 %v292
    %v458 = vpop.f32.mrf.mxu0
    %v459 = vadd.f32 0.0, %v458
    %v460 = vpop.f32.mrf.mxu0
    %v461 = vadd.f32 0.0, %v460
    %462 = vmatmul.bf16.gmra.mxu0 %v295
    %v463 = vpop.f32.mrf.mxu0
    %v464 = vadd.f32 0.0, %v463
    %v465 = vpop.f32.mrf.mxu0
    %v466 = vadd.f32 0.0, %v465
    %467 = vdwg.mxu0
    %468 = vmatpush.bf16.msra.mxu0 0
    %469 = vmatpush.bf16.msra.mxu0 0
    %470 = vmatpush.bf16.msra.mxu0 0
    %471 = vmatpush.bf16.msra.mxu0 0
    %472 = vmatpush.bf16.msra.mxu0 %v249
    %473 = vmatpush.bf16.msra.mxu0 %v239
    %474 = vmatpush.bf16.msra.mxu0 %v229
    %475 = vmatpush.bf16.msra.mxu0 %v219
    %476 = vmatmul.bf16.gmra.mxu0 %v292
    %v477 = vpop.f32.mrf.mxu0
    %v478 = vadd.f32 0.0, %v477
    %v479 = vpop.f32.mrf.mxu0
    %v480 = vadd.f32 0.0, %v479
    %481 = vmatmul.bf16.gmra.mxu0 %v295
    %v482 = vpop.f32.mrf.mxu0
    %v483 = vadd.f32 0.0, %v482
    %v484 = vpop.f32.mrf.mxu0
    %v485 = vadd.f32 0.0, %v484
    %486 = vdwg.mxu0
    %v487 = vld [vmem:[%s4] sm:$0xff]
    %v488 = vld [vmem:[%s4 + $0x8] sm:$0xff]
    %v489 = vld [vmem:[%s4 + $0x10] sm:$0xff]
    %v490 = vld [vmem:[%s4 + $0x18] sm:$0xff]
    %v491 = vld [vmem:[%s4 + $0x20] sm:$0xff]
    %v492 = vld [vmem:[%s4 + $0x28] sm:$0xff]
    %v493 = vld [vmem:[%s4 + $0x30] sm:$0xff]
    %v494 = vld [vmem:[%s4 + $0x38] sm:$0xff]
    %v495 = vld [vmem:[%s5] sm:$0xff]
    %v496 = vld [vmem:[%s5 + $0x8] sm:$0xff]
    %v497 = vld [vmem:[%s5 + $0x10] sm:$0xff]
    %v498 = vld [vmem:[%s5 + $0x18] sm:$0xff]
    %v499 = vld [vmem:[%s5 + $0x20] sm:$0xff]
    %v500 = vld [vmem:[%s5 + $0x28] sm:$0xff]
    %v501 = vld [vmem:[%s5 + $0x30] sm:$0xff]
    %v502 = vld [vmem:[%s5 + $0x38] sm:$0xff]
    %v503 = vmul.f32 %v307, %v487
    %v504 = vmul.f32 %v326, %v488
    %v505 = vmul.f32 %v309, %v489
    %v506 = vmul.f32 %v328, %v490
    %v507 = vmul.f32 %v312, %v491
    %v508 = vmul.f32 %v331, %v492
    %v509 = vmul.f32 %v314, %v493
    %v510 = vmul.f32 %v333, %v494
    %v511 = vmul.f32 %v421, %v495
    %v512 = vmul.f32 %v440, %v496
    %v513 = vmul.f32 %v423, %v497
    %v514 = vmul.f32 %v442, %v498
    %v515 = vmul.f32 %v426, %v499
    %v516 = vmul.f32 %v445, %v500
    %v517 = vmul.f32 %v428, %v501
    %v518 = vmul.f32 %v447, %v502
    %v519 = vadd.f32 %v503, %v511
    %v520 = vadd.f32 %v504, %v512
    %v521 = vadd.f32 %v505, %v513
    %v522 = vadd.f32 %v506, %v514
    %v523 = vadd.f32 %v507, %v515
    %v524 = vadd.f32 %v508, %v516
    %v525 = vadd.f32 %v509, %v517
    %v526 = vadd.f32 %v510, %v518
    %v527 = vpack.c.bf16 %v520, %v519
    %v528 = vpack.c.bf16 %v522, %v521
    %v529 = vpack.c.bf16 %v524, %v523
    %v530 = vpack.c.bf16 %v526, %v525
    %v531 = vmul.f32 %v345, %v487
    %v532 = vmul.f32 %v364, %v488
    %v533 = vmul.f32 %v347, %v489
    %v534 = vmul.f32 %v366, %v490
    %v535 = vmul.f32 %v350, %v491
    %v536 = vmul.f32 %v369, %v492
    %v537 = vmul.f32 %v352, %v493
    %v538 = vmul.f32 %v371, %v494
    %v539 = vmul.f32 %v459, %v495
    %v540 = vmul.f32 %v478, %v496
    %v541 = vmul.f32 %v461, %v497
    %v542 = vmul.f32 %v480, %v498
    %v543 = vmul.f32 %v464, %v499
    %v544 = vmul.f32 %v483, %v500
    %v545 = vmul.f32 %v466, %v501
    %v546 = vmul.f32 %v485, %v502
    %v547 = vadd.f32 %v531, %v539
    %v548 = vadd.f32 %v532, %v540
    %v549 = vadd.f32 %v533, %v541
    %v550 = vadd.f32 %v534, %v542
    %v551 = vadd.f32 %v535, %v543
    %v552 = vadd.f32 %v536, %v544
    %v553 = vadd.f32 %v537, %v545
    %v554 = vadd.f32 %v538, %v546
    %v555 = vpack.c.bf16 %v548, %v547
    %v556 = vpack.c.bf16 %v550, %v549
    %v557 = vpack.c.bf16 %v552, %v551
    %v558 = vpack.c.bf16 %v554, %v553
    %v559 = vpack.c.bf16 %v402, %v383
    %v560 = vpack.c.bf16 %v404, %v385
    %v561 = vpack.c.bf16 %v407, %v388
    %v562 = vpack.c.bf16 %v409, %v390
    %v563 = vld [vmem:[%s6] sm:$0xff]
    %v564 = vld [vmem:[%s6 + $0x8] sm:$0xff]
    %v565 = vld [vmem:[%s6 + $0x10] sm:$0xff]
    %v566 = vld [vmem:[%s6 + $0x18] sm:$0xff]
    %v571 = vunpack.c.l.b16 %v527
    %v572 = vunpack.c.l.b16 %v528
    %v573 = vunpack.c.l.b16 %v529
    %v574 = vunpack.c.l.b16 %v530
    %v575 = vpack.c.b16 %v572, %v571
    %v576 = vpack.c.b16 %v574, %v573
    %v583 = vunpack.c.l.b16 %v555
    %v584 = vunpack.c.l.b16 %v556
    %v585 = vunpack.c.l.b16 %v557
    %v586 = vunpack.c.l.b16 %v558
    %v587 = vpack.c.b16 %v584, %v583
    %v588 = vpack.c.b16 %v586, %v585
    %591 = vmatpush.bf16.xpose.msra.mxu0 0
    %592 = vmatpush.bf16.xpose.msra.mxu0 0
    %593 = vmatpush.bf16.xpose.msra.mxu0 0
    %594 = vmatpush.bf16.xpose.msra.mxu0 0
    %595 = vmatpush.bf16.xpose.msra.mxu0 0
    %596 = vmatpush.bf16.xpose.msra.mxu0 0
    %597 = vmatpush.bf16.xpose.msra.mxu0 %v588
    %598 = vmatpush.bf16.xpose.msra.mxu0 %v587
    %599 = vmatmul.bf16.gmra.mxu0 %v575
    %v600 = vpop.f32.mrf.mxu0
    %v601 = vadd.f32 %v563, %v600
    %v602 = vpop.f32.mrf.mxu0
    %v603 = vadd.f32 %v564, %v602
    %604 = vmatmul.bf16.gmra.mxu0 %v576
    %v605 = vpop.f32.mrf.mxu0
    %v606 = vadd.f32 %v565, %v605
    %v607 = vpop.f32.mrf.mxu0
    %v608 = vadd.f32 %v566, %v607
    %609 = vdwg.mxu0
    %vm610 = vcmask 261120
    %v611 = vsel %vm610, %v601, -inf
    %612 = vmax.xlane.f32.xlu0 %v611
    %v613 = vpop.xlane.xlu0 %612
    %v614 = vsel %vm610, %v603, -inf
    %615 = vmax.xlane.f32.xlu0 %v614
    %v616 = vpop.xlane.xlu0 %615
    %v617 = vsel %vm610, %v606, -inf
    %618 = vmax.xlane.f32.xlu0 %v617
    %v619 = vpop.xlane.xlu0 %618
    %v620 = vsel %vm610, %v608, -inf
    %621 = vmax.xlane.f32.xlu0 %v620
    %v622 = vpop.xlane.xlu0 %621
    %v623 = vsub.f32 %v601, %v613
    %v624 = vsub.f32 %v603, %v616
    %v625 = vsub.f32 %v606, %v619
    %v626 = vsub.f32 %v608, %v622
    %v627 = vmul.f32 %v623, 1.442695
    %v628 = vpow.pop %v627
    %v629 = vmul.f32 %v624, 1.442695
    %v630 = vpow.pop %v629
    %v631 = vmul.f32 %v625, 1.442695
    %v632 = vpow.pop %v631
    %v633 = vmul.f32 %v626, 1.442695
    %v634 = vpow.pop %v633
    %v635 = vsel %vm610, %v628, 0.0
    %636 = vadd.xlane.f32.xlu0 %v635
    %v637 = vpop.xlane.xlu0 %636
    %v638 = vsel %vm610, %v630, 0.0
    %639 = vadd.xlane.f32.xlu0 %v638
    %v640 = vpop.xlane.xlu0 %639
    %v641 = vsel %vm610, %v632, 0.0
    %642 = vadd.xlane.f32.xlu0 %v641
    %v643 = vpop.xlane.xlu0 %642
    %v644 = vsel %vm610, %v634, 0.0
    %645 = vadd.xlane.f32.xlu0 %v644
    %v646 = vpop.xlane.xlu0 %645
    %v647 = vrcp.pop %v637
    %v648 = vmul.f32 %v637, %v647
    %v649 = vsub.f32 1.0, %v648
    %v650 = vmul.f32 %v647, %v649
    %v651 = vadd.f32 %v647, %v650
    %vm652 = vweird.f32 %v637
    %vm653 = vweird.f32 %v647
    %vm654 = vmor %vm652, %vm653
    %v655 = vsel %vm654, %v647, %v651
    %v656 = vand.u32 2147483647, %v637
    %vm657 = vcmp.eq.f32.partialorder %v656, 8.507059e+37
    %v658 = vand.u32 %v637, 2147483648
    %v659 = vor.u32 1.1754944e-38, %v658
    %v660 = vsel %vm657, %v659, %v655
    %v661 = vmul.f32 %v628, %v660
    %v662 = vrcp.pop %v640
    %v663 = vmul.f32 %v640, %v662
    %v664 = vsub.f32 1.0, %v663
    %v665 = vmul.f32 %v662, %v664
    %v666 = vadd.f32 %v662, %v665
    %vm667 = vweird.f32 %v640
    %vm668 = vweird.f32 %v662
    %vm669 = vmor %vm667, %vm668
    %v670 = vsel %vm669, %v662, %v666
    %v671 = vand.u32 2147483647, %v640
    %vm672 = vcmp.eq.f32.partialorder %v671, 8.507059e+37
    %v673 = vand.u32 %v640, 2147483648
    %v674 = vor.u32 1.1754944e-38, %v673
    %v675 = vsel %vm672, %v674, %v670
    %v676 = vmul.f32 %v630, %v675
    %v677 = vrcp.pop %v643
    %v678 = vmul.f32 %v643, %v677
    %v679 = vsub.f32 1.0, %v678
    %v680 = vmul.f32 %v677, %v679
    %v681 = vadd.f32 %v677, %v680
    %vm682 = vweird.f32 %v643
    %vm683 = vweird.f32 %v677
    %vm684 = vmor %vm682, %vm683
    %v685 = vsel %vm684, %v677, %v681
    %v686 = vand.u32 2147483647, %v643
    %vm687 = vcmp.eq.f32.partialorder %v686, 8.507059e+37
    %v688 = vand.u32 %v643, 2147483648
    %v689 = vor.u32 1.1754944e-38, %v688
    %v690 = vsel %vm687, %v689, %v685
    %v691 = vmul.f32 %v632, %v690
    %v692 = vrcp.pop %v646
    %v693 = vmul.f32 %v646, %v692
    %v694 = vsub.f32 1.0, %v693
    %v695 = vmul.f32 %v692, %v694
    %v696 = vadd.f32 %v692, %v695
    %vm697 = vweird.f32 %v646
    %vm698 = vweird.f32 %v692
    %vm699 = vmor %vm697, %vm698
    %v700 = vsel %vm699, %v692, %v696
    %v701 = vand.u32 2147483647, %v646
    %vm702 = vcmp.eq.f32.partialorder %v701, 8.507059e+37
    %v703 = vand.u32 %v646, 2147483648
    %v704 = vor.u32 1.1754944e-38, %v703
    %v705 = vsel %vm702, %v704, %v700
    %v706 = vmul.f32 %v634, %v705
    %v707 = vpack.c.bf16 %v676, %v661
    %v708 = vpack.c.bf16 %v706, %v691
    %v713 = vunpack.c.l.b16 %v559
    %v714 = vunpack.c.l.b16 %v560
    %v715 = vunpack.c.l.b16 %v561
    %v716 = vunpack.c.l.b16 %v562
    %v717 = vpack.c.b16 %v714, %v713
    %v718 = vpack.c.b16 %v716, %v715
    %v722 = vsel %vm610, %v707, 0
    %v725 = vsel %vm610, %v708, 0
    %727 = vmatpush.bf16.msra.mxu0 0
    %728 = vmatpush.bf16.msra.mxu0 0
    %729 = vmatpush.bf16.msra.mxu0 0
    %730 = vmatpush.bf16.msra.mxu0 0
    %731 = vmatpush.bf16.msra.mxu0 0
    %732 = vmatpush.bf16.msra.mxu0 0
    %733 = vmatpush.bf16.msra.mxu0 %v718
    %734 = vmatpush.bf16.msra.mxu0 %v717
    %735 = vmatmul.bf16.gmra.mxu0 %v722
    %v736 = vpop.f32.mrf.mxu0
    %v737 = vadd.f32 0.0, %v736
    %v738 = vpop.f32.mrf.mxu0
    %v739 = vadd.f32 0.0, %v738
    %740 = vmatmul.bf16.gmra.mxu0 %v725
    %v741 = vpop.f32.mrf.mxu0
    %v742 = vadd.f32 0.0, %v741
    %v743 = vpop.f32.mrf.mxu0
    %v744 = vadd.f32 0.0, %v743
    %745 = vdwg.mxu0
    %v746 = vunpack.c.h.b16 %v527
    %v747 = vunpack.c.h.b16 %v528
    %v748 = vunpack.c.h.b16 %v529
    %v749 = vunpack.c.h.b16 %v530
    %v750 = vpack.c.b16 %v747, %v746
    %v751 = vpack.c.b16 %v749, %v748
    %v754 = vunpack.c.h.b16 %v555
    %v755 = vunpack.c.h.b16 %v556
    %v756 = vunpack.c.h.b16 %v557
    %v757 = vunpack.c.h.b16 %v558
    %v758 = vpack.c.b16 %v755, %v754
    %v759 = vpack.c.b16 %v757, %v756
    %762 = vmatpush.bf16.xpose.msra.mxu0 0
    %763 = vmatpush.bf16.xpose.msra.mxu0 0
    %764 = vmatpush.bf16.xpose.msra.mxu0 0
    %765 = vmatpush.bf16.xpose.msra.mxu0 0
    %766 = vmatpush.bf16.xpose.msra.mxu0 0
    %767 = vmatpush.bf16.xpose.msra.mxu0 0
    %768 = vmatpush.bf16.xpose.msra.mxu0 %v759
    %769 = vmatpush.bf16.xpose.msra.mxu0 %v758
    %770 = vmatmul.bf16.gmra.mxu0 %v750
    %v771 = vpop.f32.mrf.mxu0
    %v772 = vadd.f32 %v563, %v771
    %v773 = vpop.f32.mrf.mxu0
    %v774 = vadd.f32 %v564, %v773
    %775 = vmatmul.bf16.gmra.mxu0 %v751
    %v776 = vpop.f32.mrf.mxu0
    %v777 = vadd.f32 %v565, %v776
    %v778 = vpop.f32.mrf.mxu0
    %v779 = vadd.f32 %v566, %v778
    %780 = vdwg.mxu0
    %v781 = vsel %vm610, %v772, -inf
    %782 = vmax.xlane.f32.xlu0 %v781
    %v783 = vpop.xlane.xlu0 %782
    %v784 = vsel %vm610, %v774, -inf
    %785 = vmax.xlane.f32.xlu0 %v784
    %v786 = vpop.xlane.xlu0 %785
    %v787 = vsel %vm610, %v777, -inf
    %788 = vmax.xlane.f32.xlu0 %v787
    %v789 = vpop.xlane.xlu0 %788
    %v790 = vsel %vm610, %v779, -inf
    %791 = vmax.xlane.f32.xlu0 %v790
    %v792 = vpop.xlane.xlu0 %791
    %v793 = vsub.f32 %v772, %v783
    %v794 = vsub.f32 %v774, %v786
    %v795 = vsub.f32 %v777, %v789
    %v796 = vsub.f32 %v779, %v792
    %v797 = vmul.f32 %v793, 1.442695
    %v798 = vpow.pop %v797
    %v799 = vmul.f32 %v794, 1.442695
    %v800 = vpow.pop %v799
    %v801 = vmul.f32 %v795, 1.442695
    %v802 = vpow.pop %v801
    %v803 = vmul.f32 %v796, 1.442695
    %v804 = vpow.pop %v803
    %v805 = vsel %vm610, %v798, 0.0
    %806 = vadd.xlane.f32.xlu0 %v805
    %v807 = vpop.xlane.xlu0 %806
    %v808 = vsel %vm610, %v800, 0.0
    %809 = vadd.xlane.f32.xlu0 %v808
    %v810 = vpop.xlane.xlu0 %809
    %v811 = vsel %vm610, %v802, 0.0
    %812 = vadd.xlane.f32.xlu0 %v811
    %v813 = vpop.xlane.xlu0 %812
    %v814 = vsel %vm610, %v804, 0.0
    %815 = vadd.xlane.f32.xlu0 %v814
    %v816 = vpop.xlane.xlu0 %815
    %v817 = vrcp.pop %v807
    %v818 = vmul.f32 %v807, %v817
    %v819 = vsub.f32 1.0, %v818
    %v820 = vmul.f32 %v817, %v819
    %v821 = vadd.f32 %v817, %v820
    %vm822 = vweird.f32 %v807
    %vm823 = vweird.f32 %v817
    %vm824 = vmor %vm822, %vm823
    %v825 = vsel %vm824, %v817, %v821
    %v826 = vand.u32 2147483647, %v807
    %vm827 = vcmp.eq.f32.partialorder %v826, 8.507059e+37
    %v828 = vand.u32 %v807, 2147483648
    %v829 = vor.u32 1.1754944e-38, %v828
    %v830 = vsel %vm827, %v829, %v825
    %v831 = vmul.f32 %v798, %v830
    %v832 = vrcp.pop %v810
    %v833 = vmul.f32 %v810, %v832
    %v834 = vsub.f32 1.0, %v833
    %v835 = vmul.f32 %v832, %v834
    %v836 = vadd.f32 %v832, %v835
    %vm837 = vweird.f32 %v810
    %vm838 = vweird.f32 %v832
    %vm839 = vmor %vm837, %vm838
    %v840 = vsel %vm839, %v832, %v836
    %v841 = vand.u32 2147483647, %v810
    %vm842 = vcmp.eq.f32.partialorder %v841, 8.507059e+37
    %v843 = vand.u32 %v810, 2147483648
    %v844 = vor.u32 1.1754944e-38, %v843
    %v845 = vsel %vm842, %v844, %v840
    %v846 = vmul.f32 %v800, %v845
    %v847 = vrcp.pop %v813
    %v848 = vmul.f32 %v813, %v847
    %v849 = vsub.f32 1.0, %v848
    %v850 = vmul.f32 %v847, %v849
    %v851 = vadd.f32 %v847, %v850
    %vm852 = vweird.f32 %v813
    %vm853 = vweird.f32 %v847
    %vm854 = vmor %vm852, %vm853
    %v855 = vsel %vm854, %v847, %v851
    %v856 = vand.u32 2147483647, %v813
    %vm857 = vcmp.eq.f32.partialorder %v856, 8.507059e+37
    %v858 = vand.u32 %v813, 2147483648
    %v859 = vor.u32 1.1754944e-38, %v858
    %v860 = vsel %vm857, %v859, %v855
    %v861 = vmul.f32 %v802, %v860
    %v862 = vrcp.pop %v816
    %v863 = vmul.f32 %v816, %v862
    %v864 = vsub.f32 1.0, %v863
    %v865 = vmul.f32 %v862, %v864
    %v866 = vadd.f32 %v862, %v865
    %vm867 = vweird.f32 %v816
    %vm868 = vweird.f32 %v862
    %vm869 = vmor %vm867, %vm868
    %v870 = vsel %vm869, %v862, %v866
    %v871 = vand.u32 2147483647, %v816
    %vm872 = vcmp.eq.f32.partialorder %v871, 8.507059e+37
    %v873 = vand.u32 %v816, 2147483648
    %v874 = vor.u32 1.1754944e-38, %v873
    %v875 = vsel %vm872, %v874, %v870
    %v876 = vmul.f32 %v804, %v875
    %v877 = vpack.c.bf16 %v846, %v831
    %v878 = vpack.c.bf16 %v876, %v861
    %v879 = vunpack.c.h.b16 %v559
    %v880 = vunpack.c.h.b16 %v560
    %v881 = vunpack.c.h.b16 %v561
    %v882 = vunpack.c.h.b16 %v562
    %v883 = vpack.c.b16 %v880, %v879
    %v884 = vpack.c.b16 %v882, %v881
    %v888 = vsel %vm610, %v877, 0
    %v891 = vsel %vm610, %v878, 0
    %893 = vmatpush.bf16.msra.mxu0 0
    %894 = vmatpush.bf16.msra.mxu0 0
    %895 = vmatpush.bf16.msra.mxu0 0
    %896 = vmatpush.bf16.msra.mxu0 0
    %897 = vmatpush.bf16.msra.mxu0 0
    %898 = vmatpush.bf16.msra.mxu0 0
    %899 = vmatpush.bf16.msra.mxu0 %v884
    %900 = vmatpush.bf16.msra.mxu0 %v883
    %901 = vmatmul.bf16.gmra.mxu0 %v888
    %v902 = vpop.f32.mrf.mxu0
    %v903 = vadd.f32 0.0, %v902
    %v904 = vpop.f32.mrf.mxu0
    %v905 = vadd.f32 0.0, %v904
    %906 = vmatmul.bf16.gmra.mxu0 %v891
    %v907 = vpop.f32.mrf.mxu0
    %v908 = vadd.f32 0.0, %v907
    %v909 = vpop.f32.mrf.mxu0
    %v910 = vadd.f32 0.0, %v909
    %911 = vdwg.mxu0
    %v912 = vpack.c.bf16 %v739, %v737
    %v913 = vpack.c.bf16 %v905, %v903
    %v914 = vpack.c.bf16 %v744, %v742
    %v915 = vpack.c.bf16 %v910, %v908
    %v916 = vld [vmem:[%s2] sm:$0xf]
    %v917 = vld [vmem:[%s2 + $0x4] sm:$0xf]
    %v918 = vld [vmem:[%s2 + $0x8] sm:$0xf]
    %v919 = vld [vmem:[%s2 + $0xc] sm:$0xf]
    %v920 = vld [vmem:[%s2 + $0x10] sm:$0xf]
    %v921 = vld [vmem:[%s2 + $0x14] sm:$0xf]
    %v922 = vld [vmem:[%s2 + $0x18] sm:$0xf]
    %v923 = vld [vmem:[%s2 + $0x1c] sm:$0xf]
    %v924 = vld [vmem:[%s2 + $0x20] sm:$0xf]
    %v925 = vld [vmem:[%s2 + $0x24] sm:$0xf]
    %v926 = vld [vmem:[%s2 + $0x28] sm:$0xf]
    %v927 = vld [vmem:[%s2 + $0x2c] sm:$0xf]
    %v928 = vld [vmem:[%s2 + $0x30] sm:$0xf]
    %v929 = vld [vmem:[%s2 + $0x34] sm:$0xf]
    %v930 = vld [vmem:[%s2 + $0x38] sm:$0xf]
    %v931 = vld [vmem:[%s2 + $0x3c] sm:$0xf]
    %v932 = vld [vmem:[%s2 + $0x40] sm:$0xf]
    %v933 = vld [vmem:[%s2 + $0x44] sm:$0xf]
    %v934 = vld [vmem:[%s2 + $0x48] sm:$0xf]
    %v935 = vld [vmem:[%s2 + $0x4c] sm:$0xf]
    %v936 = vld [vmem:[%s2 + $0x50] sm:$0xf]
    %v937 = vld [vmem:[%s2 + $0x54] sm:$0xf]
    %v938 = vld [vmem:[%s2 + $0x58] sm:$0xf]
    %v939 = vld [vmem:[%s2 + $0x5c] sm:$0xf]
    %v940 = vld [vmem:[%s2 + $0x60] sm:$0xf]
    %v941 = vld [vmem:[%s2 + $0x64] sm:$0xf]
    %v942 = vld [vmem:[%s2 + $0x68] sm:$0xf]
    %v943 = vld [vmem:[%s2 + $0x6c] sm:$0xf]
    %v944 = vld [vmem:[%s2 + $0x70] sm:$0xf]
    %v945 = vld [vmem:[%s2 + $0x74] sm:$0xf]
    %v946 = vld [vmem:[%s2 + $0x78] sm:$0xf]
    %v947 = vld [vmem:[%s2 + $0x7c] sm:$0xf]
    %v948 = vld [vmem:[%s3] sm:$0x1]
    %v950 = vperm.slane %v948, 0
    %v984 = vunpack.c.l.b16 %v916
    %v985 = vunpack.c.l.b16 %v917
    %v986 = vunpack.c.l.b16 %v918
    %v987 = vunpack.c.l.b16 %v919
    %v988 = vunpack.c.l.b16 %v920
    %v989 = vunpack.c.l.b16 %v921
    %v990 = vunpack.c.l.b16 %v922
    %v991 = vunpack.c.l.b16 %v923
    %v992 = vunpack.c.l.b16 %v924
    %v993 = vunpack.c.l.b16 %v925
    %v994 = vunpack.c.l.b16 %v926
    %v995 = vunpack.c.l.b16 %v927
    %v996 = vunpack.c.l.b16 %v928
    %v997 = vunpack.c.l.b16 %v929
    %v998 = vunpack.c.l.b16 %v930
    %v999 = vunpack.c.l.b16 %v931
    %v1000 = vunpack.c.l.b16 %v932
    %v1001 = vunpack.c.l.b16 %v933
    %v1002 = vunpack.c.l.b16 %v934
    %v1003 = vunpack.c.l.b16 %v935
    %v1004 = vunpack.c.l.b16 %v936
    %v1005 = vunpack.c.l.b16 %v937
    %v1006 = vunpack.c.l.b16 %v938
    %v1007 = vunpack.c.l.b16 %v939
    %v1008 = vunpack.c.l.b16 %v940
    %v1009 = vunpack.c.l.b16 %v941
    %v1010 = vunpack.c.l.b16 %v942
    %v1011 = vunpack.c.l.b16 %v943
    %v1012 = vunpack.c.l.b16 %v944
    %v1013 = vunpack.c.l.b16 %v945
    %v1014 = vunpack.c.l.b16 %v946
    %v1015 = vunpack.c.l.b16 %v947
    %v1016 = vpack.c.b16 %v985, %v984
    %v1017 = vpack.c.b16 %v987, %v986
    %v1018 = vpack.c.b16 %v989, %v988
    %v1019 = vpack.c.b16 %v991, %v990
    %v1020 = vpack.c.b16 %v993, %v992
    %v1021 = vpack.c.b16 %v995, %v994
    %v1022 = vpack.c.b16 %v997, %v996
    %v1023 = vpack.c.b16 %v999, %v998
    %v1024 = vpack.c.b16 %v1001, %v1000
    %v1025 = vpack.c.b16 %v1003, %v1002
    %v1026 = vpack.c.b16 %v1005, %v1004
    %v1027 = vpack.c.b16 %v1007, %v1006
    %v1028 = vpack.c.b16 %v1009, %v1008
    %v1029 = vpack.c.b16 %v1011, %v1010
    %v1030 = vpack.c.b16 %v1013, %v1012
    %v1031 = vpack.c.b16 %v1015, %v1014
    %1048 = vmatpush.bf16.msra.mxu0 %v1023
    %1049 = vmatpush.bf16.msra.mxu0 %v1022
    %1050 = vmatpush.bf16.msra.mxu0 %v1021
    %1051 = vmatpush.bf16.msra.mxu0 %v1020
    %1052 = vmatpush.bf16.msra.mxu0 %v1019
    %1053 = vmatpush.bf16.msra.mxu0 %v1018
    %1054 = vmatpush.bf16.msra.mxu0 %v1017
    %1055 = vmatpush.bf16.msra.mxu0 %v1016
    %1056 = vmatmul.bf16.gmra.mxu0 %v912
    %v1057 = vpop.f32.mrf.mxu0
    %v1058 = vadd.f32 %v950, %v1057
    %v1059 = vpop.f32.mrf.mxu0
    %v1060 = vadd.f32 %v950, %v1059
    %1061 = vmatmul.bf16.gmra.mxu0 %v914
    %v1062 = vpop.f32.mrf.mxu0
    %v1063 = vadd.f32 %v950, %v1062
    %v1064 = vpop.f32.mrf.mxu0
    %v1065 = vadd.f32 %v950, %v1064
    %1066 = vdwg.mxu0
    %1067 = vmatpush.bf16.msra.mxu0 %v1031
    %1068 = vmatpush.bf16.msra.mxu0 %v1030
    %1069 = vmatpush.bf16.msra.mxu0 %v1029
    %1070 = vmatpush.bf16.msra.mxu0 %v1028
    %1071 = vmatpush.bf16.msra.mxu0 %v1027
    %1072 = vmatpush.bf16.msra.mxu0 %v1026
    %1073 = vmatpush.bf16.msra.mxu0 %v1025
    %1074 = vmatpush.bf16.msra.mxu0 %v1024
    %1075 = vmatmul.bf16.gmra.mxu0 %v913
    %v1076 = vpop.f32.mrf.mxu0
    %v1077 = vadd.f32 %v1058, %v1076
    %v1078 = vpop.f32.mrf.mxu0
    %v1079 = vadd.f32 %v1060, %v1078
    %1080 = vmatmul.bf16.gmra.mxu0 %v915
    %v1081 = vpop.f32.mrf.mxu0
    %v1082 = vadd.f32 %v1063, %v1081
    %v1083 = vpop.f32.mrf.mxu0
    %v1084 = vadd.f32 %v1065, %v1083
    %1085 = vdwg.mxu0
    %1086 = vst.msk [vmem:[#allocation5] sm:$0xff] %vm290, %v1077
    %1087 = vst.msk [vmem:[#allocation5 + $0x8] sm:$0xff] %vm290, %v1079
    %1088 = vst.msk [vmem:[#allocation5 + $0x10] sm:$0xff] %vm290, %v1082
    %1089 = vst.msk [vmem:[#allocation5 + $0x18] sm:$0xff] %vm290, %v1084
    // Predicated region
    $region34: #{tpu_custom_call.1} parent=1 // pred_check
      _
    $region35: #{tpu_custom_call.1} parent=1 // pred_check_branch
      %1091 = sbr.rel (0) target = $region37
    $region36: #{tpu_custom_call.1} parent=1 // pred_region
      %1093 = vsyncadd [#allocation4], 0
      %s1094 = sshll.u32 [#allocation5], 4
      %s1095 = int_to_ptr.vmem [resolvable:$true] %s1094
      %s1096 = sshll.u32 %s7, 4
      %s1097 = int_to_ptr.hbm [resolvable:$true] %s1096
      %1102 = dma.vmem_to_hbm [thread:$0]  %s1095, 512, %s1097, [#allocation4], 128, 128, 8
    $region37: #{tpu_custom_call.1} parent=1 // pred_fallthru
      _
    // Predicated region
    $region38: #{tpu_custom_call.1} parent=1 // pred_check
      _
    $region39: #{tpu_custom_call.1} parent=1 // pred_check_branch
      %1104 = sbr.rel (0) target = $region41
    $region40: #{tpu_custom_call.1} parent=1 // pred_region
      %1106 = dma.done [#allocation4], 512
    $region41: #{tpu_custom_call.1} parent=1 // pred_fallthru
      _
    %1107 = vsyncpa [#allocation3], 1
    %1108 = vsyncpa [#allocation4], 1

</llo_original>
